<compile_context>
chip_gen: v6e
topology: v6e:2x2x1
jax: 0.10.0
libtpu: 0.0.40
codegen_flags: <defaults>
</compile_context>

<pallas_src>
import math
from functools import partial

import jax
import jax.numpy as jnp
from jax import lax
from jax.experimental import pallas as pl
from jax.experimental.pallas import tpu as pltpu


def _tpu_vmem_capacity_bytes() -> int:
    try:
        return int(pltpu.get_tpu_info().vmem_capacity_bytes)
    except Exception:
        return 64 * 1024 * 1024   # conservative fallback: v7x per-TensorCore VMEM


def _kv_proj_kernel(num_heads: int):
    """K/V projections with head-major output: per head, (TN, C) @ (C, D)."""
    def kernel(x_ref, wk_ref, wv_ref, k_ref, v_ref):
        def body(h, carry):
            k_ref[h] = jnp.dot(x_ref[...], wk_ref[h],
                               preferred_element_type=jnp.float32).astype(k_ref.dtype)
            v_ref[h] = jnp.dot(x_ref[...], wv_ref[h],
                               preferred_element_type=jnp.float32).astype(v_ref.dtype)
            return carry
        # fori_loop (not a static Python unroll) keeps per-head live ranges bounded.
        lax.fori_loop(0, num_heads, body, 0)
    return kernel


def _attn_kernel(x_ref, wq_ref, k_ref, v_ref, wp_ref, bp_ref, o_ref, acc_ref):
    # grid = (batch, query-tile, head); head is the innermost "arbitrary" axis.
    h = pl.program_id(2)

    @pl.when(h == 0)
    def _init():
        # start the out-projection accumulator at the bias
        acc_ref[...] = jnp.broadcast_to(bp_ref[...], acc_ref.shape).astype(jnp.float32)

    # q_h = x_tile @ Wq[h]  (softmax scale pre-folded into Wq; leading-axis index only)
    q = jnp.dot(x_ref[...], wq_ref[h], preferred_element_type=jnp.float32)   # (TQ, D)
    k = k_ref[...]                                                           # (N, D) bf16
    v = v_ref[...]                                                           # (N, D) bf16

    # scores via contraction over D -- no materialized k^T
    s = lax.dot_general(q.astype(k.dtype), k, (((1,), (1,)), ((), ())),
                        preferred_element_type=jnp.float32)                  # (TQ, N) f32
    m = jnp.max(s, axis=-1, keepdims=True)
    p = jnp.exp(s - m)                                                       # f32 softmax
    l = jnp.sum(p, axis=-1, keepdims=True)                                   # (TQ, 1)
    pv = jnp.dot(p.astype(v.dtype), v, preferred_element_type=jnp.float32)   # (TQ, D)
    pv = pv * pl.reciprocal(l, approx=True)

    # fuse the output projection per head: Wproj[h] is (D, C), sublane-dim slice only.
    acc_ref[...] += jnp.dot(pv.astype(wp_ref.dtype), wp_ref[h],
                            preferred_element_type=jnp.float32)              # (TQ, C)

    @pl.when(h == pl.num_programs(2) - 1)
    def _finalize():
        o_ref[...] = acc_ref[...].astype(o_ref.dtype)


def _attention_forward_impl(x, w_qkv, w_proj, b_proj, num_heads, q_tile):
    B, N, C = x.shape
    H = num_heads
    assert C % H == 0, "dim must be divisible by num_heads"
    D = C // H
    scale = D ** -0.5
    cdt = jnp.bfloat16

    # One-time weight relayouts (fused by XLA under jit): head-major (in, out) blocks,
    # softmax scale folded into the Q weights, bf16 MXU operands.
    wq = (w_qkv[:, :C] * scale).reshape(C, H, D).transpose(1, 0, 2).astype(cdt)  # (H,C,D)
    wk = w_qkv[:, C:2 * C].reshape(C, H, D).transpose(1, 0, 2).astype(cdt)       # (H,C,D)
    wv = w_qkv[:, 2 * C:].reshape(C, H, D).transpose(1, 0, 2).astype(cdt)        # (H,C,D)
    wp = w_proj.reshape(H, D, C).astype(cdt)                                     # (H,D,C)
    bp = b_proj.reshape(1, C).astype(jnp.float32)
    xb = x.astype(cdt)

    # TODO(synk): for N not divisible by the target tile, add padded/masked query
    # tiles instead of falling back to a full-sequence tile.
    tq = q_tile if (q_tile <= N and N % q_tile == 0) else N
    n_t = N // tq
    vmem_limit = (_tpu_vmem_capacity_bytes() * 3) // 4

    # ---- kernel 1: K/V projections, head-major outputs, grid = (batch, seq tile) ----
    k_hm, v_hm = pl.pallas_call(
        _kv_proj_kernel(H),
        out_shape=(jax.ShapeDtypeStruct((B, H, N, D), cdt),
                   jax.ShapeDtypeStruct((B, H, N, D), cdt)),
        grid_spec=pltpu.PrefetchScalarGridSpec(
            num_scalar_prefetch=0,
            grid=(B, n_t),
            in_specs=[
                pl.BlockSpec((pl.Squeezed(), tq, C), lambda b, t: (b, t, 0)),   # x tile
                pl.BlockSpec((H, C, D), lambda b, t: (0, 0, 0)),                # Wk resident
                pl.BlockSpec((H, C, D), lambda b, t: (0, 0, 0)),                # Wv resident
            ],
            out_specs=[
                pl.BlockSpec((pl.Squeezed(), H, tq, D), lambda b, t: (b, 0, t, 0)),
                pl.BlockSpec((pl.Squeezed(), H, tq, D), lambda b, t: (b, 0, t, 0)),
            ],
        ),
        compiler_params=pltpu.CompilerParams(
            dimension_semantics=("parallel", "parallel"),
            vmem_limit_bytes=vmem_limit),
    )(xb, wk, wv)

    # ---- kernel 2: fused Q-proj + attention + out-proj, grid = (batch, q tile, head) ----
    out = pl.pallas_call(
        _attn_kernel,
        out_shape=jax.ShapeDtypeStruct((B, N, C), x.dtype),
        grid_spec=pltpu.PrefetchScalarGridSpec(
            num_scalar_prefetch=0,
            grid=(B, n_t, H),
            in_specs=[
                pl.BlockSpec((pl.Squeezed(), tq, C), lambda b, t, h: (b, t, 0)),   # x tile
                pl.BlockSpec((H, C, D), lambda b, t, h: (0, 0, 0)),                # Wq resident
                pl.BlockSpec((pl.Squeezed(), pl.Squeezed(), N, D),
                             lambda b, t, h: (b, h, 0, 0)),                        # K head blk
                pl.BlockSpec((pl.Squeezed(), pl.Squeezed(), N, D),
                             lambda b, t, h: (b, h, 0, 0)),                        # V head blk
                pl.BlockSpec((H, D, C), lambda b, t, h: (0, 0, 0)),                # Wproj resident
                pl.BlockSpec((1, C), lambda b, t, h: (0, 0)),                      # bias
            ],
            out_specs=pl.BlockSpec((pl.Squeezed(), tq, C), lambda b, t, h: (b, t, 0)),
            scratch_shapes=[pltpu.VMEM((tq, C), jnp.float32)],                     # out-proj acc
        ),
        compiler_params=pltpu.CompilerParams(
            dimension_semantics=("parallel", "parallel", "arbitrary"),
            vmem_limit_bytes=vmem_limit),
    )(xb, wq, k_hm, v_hm, wp, bp)
    return out


@partial(jax.jit, static_argnames=("num_heads", "q_tile"))
def attention_forward(x, w_qkv, w_proj, b_proj, *, num_heads: int, q_tile=None):
    """x: (B, N, C); w_qkv: (C, 3C); w_proj: (C, C); b_proj: (C,).

    Weights are passed pre-transposed as (in, out), i.e. y = x @ W (+ b); the 3C qkv
    columns split as [q | k | v] with head h owning columns h*D..(h+1)*D-1, matching
    the PyTorch reshape(B, N, 3, H, D).
    """
    if q_tile is None:
        # Larger query tiles on 128 MiB-VMEM parts (v5e/v6e); 256 on v7x (64 MiB).
        q_tile = 512 if _tpu_vmem_capacity_bytes() >= 100 * 1024 * 1024 else 256
    return _attention_forward_impl(x, w_qkv, w_proj, b_proj, num_heads, q_tile)


def attention_reference(x, w_qkv, w_proj, b_proj, *, num_heads: int):
    """Pure-JAX f32 reference mirroring the PyTorch forward exactly."""
    B, N, C = x.shape
    D = C // num_heads
    scale = D ** -0.5
    qkv = x @ w_qkv                                     # (B, N, 3C)
    qkv = qkv.reshape(B, N, 3, num_heads, D).transpose(2, 0, 3, 1, 4)
    q, k, v = qkv[0], qkv[1], qkv[2]                    # (B, H, N, D)
    attn = (q * scale) @ jnp.swapaxes(k, -2, -1)        # (B, H, N, N)
    attn = jax.nn.softmax(attn, axis=-1)
    o = attn @ v                                        # (B, H, N, D)
    o = jnp.swapaxes(o, 1, 2).reshape(B, N, C)
    return o @ w_proj + b_proj


if __name__ == "__main__":
    # Small shapes consistent with the module: B=2, N=8 tokens, C=32, 4 heads (D=8).
    B, N, C = 2, 8, 32
    num_heads = 4

    key = jax.random.PRNGKey(0)
    kx, kw1, kw2, kb = jax.random.split(key, 4)
    x = jax.random.normal(kx, (B, N, C), dtype=jnp.float32)
    w_qkv = jax.random.normal(kw1, (C, 3 * C), dtype=jnp.float32) / math.sqrt(C)
    w_proj = jax.random.normal(kw2, (C, C), dtype=jnp.float32) / math.sqrt(C)
    b_proj = jax.random.normal(kb, (C,), dtype=jnp.float32) * 0.02

    out = attention_forward(x, w_qkv, w_proj, b_proj, num_heads=num_heads)
    out = jax.block_until_ready(out)

    ref = attention_reference(x, w_qkv, w_proj, b_proj, num_heads=num_heads)
    assert out.shape == (B, N, C)
    max_err = float(jnp.max(jnp.abs(out - ref)))
    # bf16 MXU operands with f32 accumulation: loose-but-meaningful tolerance.
    assert jnp.allclose(out, ref, atol=5e-2, rtol=5e-2), (
        f"mismatch vs reference (max abs err {max_err:.4f})")
    print("KERNEL_OK")
</pallas_src>

<mosaic_0001>
module attributes {stable_mosaic.version = 11 : i64} {
  func.func @kernel(%arg0: i32, %arg1: i32, %arg2: memref<1x8x32xbf16, #tpu.memory_space<vmem>>, %arg3: memref<4x32x8xbf16, #tpu.memory_space<vmem>>, %arg4: memref<4x32x8xbf16, #tpu.memory_space<vmem>>, %arg5: memref<1x4x8x8xbf16, #tpu.memory_space<vmem>>, %arg6: memref<1x4x8x8xbf16, #tpu.memory_space<vmem>>) attributes {dimension_semantics = [#tpu.dimension_semantics<parallel>, #tpu.dimension_semantics<parallel>], iteration_bounds = array<i64: 2, 1>, scalar_prefetch = 0 : i64, scratch_operands = 0 : i64, tpu.core_type = #tpu.core_type<tc>, window_params = [{transform_indices = @transform_0, window_bounds = array<i64: 1, 8, 32>}, {pipeline_mode = #tpu.pipeline_mode<synchronous>, transform_indices = @transform_1, window_bounds = array<i64: 4, 32, 8>}, {pipeline_mode = #tpu.pipeline_mode<synchronous>, transform_indices = @transform_2, window_bounds = array<i64: 4, 32, 8>}, {transform_indices = @transform_3, window_bounds = array<i64: 1, 4, 8, 8>}, {transform_indices = @transform_4, window_bounds = array<i64: 1, 4, 8, 8>}]} {
    %c0_i32 = arith.constant 0 : i32
    %c4_i32 = arith.constant 4 : i32
    %0 = arith.addi %c0_i32, %c4_i32 : i32
    %c1_i32 = arith.constant 1 : i32
    scf.for %arg7 = %c0_i32 to %0 step %c1_i32  : i32 {
      %c0 = arith.constant 0 : index
      %c0_1 = arith.constant 0 : index
      %c0_2 = arith.constant 0 : index
      %1 = vector.load %arg2[%c0, %c0_1, %c0_2] : memref<1x8x32xbf16, #tpu.memory_space<vmem>>, vector<1x8x32xbf16>
      %2 = vector.shape_cast %1 : vector<1x8x32xbf16> to vector<8x32xbf16>
      %3 = arith.index_cast %arg7 : i32 to index
      %c0_3 = arith.constant 0 : index
      %c0_4 = arith.constant 0 : index
      %4 = vector.load %arg3[%3, %c0_3, %c0_4] : memref<4x32x8xbf16, #tpu.memory_space<vmem>>, vector<1x32x8xbf16>
      %5 = vector.shape_cast %4 : vector<1x32x8xbf16> to vector<32x8xbf16>
      %cst = arith.constant dense<0.000000e+00> : vector<8x8xf32>
      %6 = tpu.matmul %2, %5, %cst {dimension_numbers = #tpu.dot_dimension_numbers<[1], [0], [0], [1], [0, 0, 1, 1], [], []>} : vector<8x32xbf16>, vector<32x8xbf16>, vector<8x8xf32> -> vector<8x8xf32>
      %7 = arith.truncf %6 : vector<8x8xf32> to vector<8x8xbf16>
      %c0_5 = arith.constant 0 : index
      %8 = arith.index_cast %arg7 : i32 to index
      %c0_6 = arith.constant 0 : index
      %c0_7 = arith.constant 0 : index
      %9 = vector.load %arg5[%c0_5, %8, %c0_6, %c0_7] : memref<1x4x8x8xbf16, #tpu.memory_space<vmem>>, vector<1x1x8x8xbf16>
      %10 = vector.shape_cast %9 : vector<1x1x8x8xbf16> to vector<8x8xbf16>
      %11 = vector.shape_cast %7 : vector<8x8xbf16> to vector<1x1x8x8xbf16>
      tpu.vector_store %arg5[%c0_5, %8, %c0_6, %c0_7], %11 {strides = array<i32>} : memref<1x4x8x8xbf16, #tpu.memory_space<vmem>>, vector<1x1x8x8xbf16>,
      %c0_8 = arith.constant 0 : index
      %c0_9 = arith.constant 0 : index
      %c0_10 = arith.constant 0 : index
      %12 = vector.load %arg2[%c0_8, %c0_9, %c0_10] : memref<1x8x32xbf16, #tpu.memory_space<vmem>>, vector<1x8x32xbf16>
      %13 = vector.shape_cast %12 : vector<1x8x32xbf16> to vector<8x32xbf16>
      %14 = arith.index_cast %arg7 : i32 to index
      %c0_11 = arith.constant 0 : index
      %c0_12 = arith.constant 0 : index
      %15 = vector.load %arg4[%14, %c0_11, %c0_12] : memref<4x32x8xbf16, #tpu.memory_space<vmem>>, vector<1x32x8xbf16>
      %16 = vector.shape_cast %15 : vector<1x32x8xbf16> to vector<32x8xbf16>
      %cst_13 = arith.constant dense<0.000000e+00> : vector<8x8xf32>
      %17 = tpu.matmul %13, %16, %cst_13 {dimension_numbers = #tpu.dot_dimension_numbers<[1], [0], [0], [1], [0, 0, 1, 1], [], []>} : vector<8x32xbf16>, vector<32x8xbf16>, vector<8x8xf32> -> vector<8x8xf32>
      %18 = arith.truncf %17 : vector<8x8xf32> to vector<8x8xbf16>
      %c0_14 = arith.constant 0 : index
      %19 = arith.index_cast %arg7 : i32 to index
      %c0_15 = arith.constant 0 : index
      %c0_16 = arith.constant 0 : index
      %20 = vector.load %arg6[%c0_14, %19, %c0_15, %c0_16] : memref<1x4x8x8xbf16, #tpu.memory_space<vmem>>, vector<1x1x8x8xbf16>
      %21 = vector.shape_cast %20 : vector<1x1x8x8xbf16> to vector<8x8xbf16>
      %22 = vector.shape_cast %18 : vector<8x8xbf16> to vector<1x1x8x8xbf16>
      tpu.vector_store %arg6[%c0_14, %19, %c0_15, %c0_16], %22 {strides = array<i32>} : memref<1x4x8x8xbf16, #tpu.memory_space<vmem>>, vector<1x1x8x8xbf16>,
    }
    %c4_i32_0 = arith.constant 4 : i32
    return
  }
  func.func @transform_0(%arg0: i32, %arg1: i32) -> (i32, i32, i32) {
    %c0_i32 = arith.constant 0 : i32
    %c0_i32_0 = arith.constant 0 : i32
    return %arg0, %arg1, %c0_i32 : i32, i32, i32
  }
  func.func @transform_1(%arg0: i32, %arg1: i32) -> (i32, i32, i32) {
    %c0_i32 = arith.constant 0 : i32
    %c0_i32_0 = arith.constant 0 : i32
    %c0_i32_1 = arith.constant 0 : i32
    %c0_i32_2 = arith.constant 0 : i32
    return %c0_i32, %c0_i32_0, %c0_i32_1 : i32, i32, i32
  }
  func.func @transform_2(%arg0: i32, %arg1: i32) -> (i32, i32, i32) {
    %c0_i32 = arith.constant 0 : i32
    %c0_i32_0 = arith.constant 0 : i32
    %c0_i32_1 = arith.constant 0 : i32
    %c0_i32_2 = arith.constant 0 : i32
    return %c0_i32, %c0_i32_0, %c0_i32_1 : i32, i32, i32
  }
  func.func @transform_3(%arg0: i32, %arg1: i32) -> (i32, i32, i32, i32) {
    %c0_i32 = arith.constant 0 : i32
    %c0_i32_0 = arith.constant 0 : i32
    %c0_i32_1 = arith.constant 0 : i32
    return %arg0, %c0_i32, %arg1, %c0_i32_0 : i32, i32, i32, i32
  }
  func.func @transform_4(%arg0: i32, %arg1: i32) -> (i32, i32, i32, i32) {
    %c0_i32 = arith.constant 0 : i32
    %c0_i32_0 = arith.constant 0 : i32
    %c0_i32_1 = arith.constant 0 : i32
    return %arg0, %c0_i32, %arg1, %c0_i32_0 : i32, i32, i32, i32
  }
}

module attributes {stable_mosaic.version = 11 : i64} {
  func.func @_attn_kernel(%arg0: i32, %arg1: i32, %arg2: i32, %arg3: memref<1x8x32xbf16, #tpu.memory_space<vmem>>, %arg4: memref<4x32x8xbf16, #tpu.memory_space<vmem>>, %arg5: memref<1x1x8x8xbf16, #tpu.memory_space<vmem>>, %arg6: memref<1x1x8x8xbf16, #tpu.memory_space<vmem>>, %arg7: memref<4x8x32xbf16, #tpu.memory_space<vmem>>, %arg8: memref<1x32xf32, #tpu.memory_space<vmem>>, %arg9: memref<1x8x32xf32, #tpu.memory_space<vmem>>, %arg10: memref<8x32xf32, #tpu.memory_space<vmem>>) attributes {dimension_semantics = [#tpu.dimension_semantics<parallel>, #tpu.dimension_semantics<parallel>, #tpu.dimension_semantics<arbitrary>], iteration_bounds = array<i64: 2, 1, 4>, scalar_prefetch = 0 : i64, scratch_operands = 1 : i64, tpu.core_type = #tpu.core_type<tc>, window_params = [{transform_indices = @transform_0, window_bounds = array<i64: 1, 8, 32>}, {pipeline_mode = #tpu.pipeline_mode<synchronous>, transform_indices = @transform_1, window_bounds = array<i64: 4, 32, 8>}, {transform_indices = @transform_2, window_bounds = array<i64: 1, 1, 8, 8>}, {transform_indices = @transform_3, window_bounds = array<i64: 1, 1, 8, 8>}, {pipeline_mode = #tpu.pipeline_mode<synchronous>, transform_indices = @transform_4, window_bounds = array<i64: 4, 8, 32>}, {pipeline_mode = #tpu.pipeline_mode<synchronous>, transform_indices = @transform_5, window_bounds = array<i64: 1, 32>}, {transform_indices = @transform_6, window_bounds = array<i64: 1, 8, 32>}]} {
    %c0_i32 = arith.constant 0 : i32
    %0 = arith.cmpi eq, %arg2, %c0_i32 : i32
    %1 = arith.extui %0 : i1 to i32
    %c0_i32_0 = arith.constant 0 : i32
    %2 = arith.cmpi ne, %1, %c0_i32_0 : i32
    scf.if %2 {
      %c0_25 = arith.constant 0 : index
      %c0_26 = arith.constant 0 : index
      %38 = vector.load %arg8[%c0_25, %c0_26] : memref<1x32xf32, #tpu.memory_space<vmem>>, vector<1x32xf32>
      %39 = vector.shape_cast %38 : vector<1x32xf32> to vector<1x32xf32>
      %40 = vector.broadcast %39 : vector<1x32xf32> to vector<8x32xf32>
      %c0_27 = arith.constant 0 : index
      %c0_28 = arith.constant 0 : index
      %41 = vector.load %arg10[%c0_27, %c0_28] : memref<8x32xf32, #tpu.memory_space<vmem>>, vector<8x32xf32>
      tpu.vector_store %arg10[%c0_27, %c0_28], %40 {strides = array<i32>} : memref<8x32xf32, #tpu.memory_space<vmem>>, vector<8x32xf32>,
    } else {
    }
    %c0 = arith.constant 0 : index
    %c0_1 = arith.constant 0 : index
    %c0_2 = arith.constant 0 : index
    %3 = vector.load %arg3[%c0, %c0_1, %c0_2] : memref<1x8x32xbf16, #tpu.memory_space<vmem>>, vector<1x8x32xbf16>
    %4 = vector.shape_cast %3 : vector<1x8x32xbf16> to vector<8x32xbf16>
    %5 = arith.index_cast %arg2 : i32 to index
    %c0_3 = arith.constant 0 : index
    %c0_4 = arith.constant 0 : index
    %6 = vector.load %arg4[%5, %c0_3, %c0_4] : memref<4x32x8xbf16, #tpu.memory_space<vmem>>, vector<1x32x8xbf16>
    %7 = vector.shape_cast %6 : vector<1x32x8xbf16> to vector<32x8xbf16>
    %cst = arith.constant dense<0.000000e+00> : vector<8x8xf32>
    %8 = tpu.matmul %4, %7, %cst {dimension_numbers = #tpu.dot_dimension_numbers<[1], [0], [0], [1], [0, 0, 1, 1], [], []>} : vector<8x32xbf16>, vector<32x8xbf16>, vector<8x8xf32> -> vector<8x8xf32>
    %c0_5 = arith.constant 0 : index
    %c0_6 = arith.constant 0 : index
    %c0_7 = arith.constant 0 : index
    %c0_8 = arith.constant 0 : index
    %9 = vector.load %arg5[%c0_5, %c0_6, %c0_7, %c0_8] : memref<1x1x8x8xbf16, #tpu.memory_space<vmem>>, vector<1x1x8x8xbf16>
    %10 = vector.shape_cast %9 : vector<1x1x8x8xbf16> to vector<8x8xbf16>
    %c0_9 = arith.constant 0 : index
    %c0_10 = arith.constant 0 : index
    %c0_11 = arith.constant 0 : index
    %c0_12 = arith.constant 0 : index
    %11 = vector.load %arg6[%c0_9, %c0_10, %c0_11, %c0_12] : memref<1x1x8x8xbf16, #tpu.memory_space<vmem>>, vector<1x1x8x8xbf16>
    %12 = vector.shape_cast %11 : vector<1x1x8x8xbf16> to vector<8x8xbf16>
    %13 = arith.truncf %8 : vector<8x8xf32> to vector<8x8xbf16>
    %cst_13 = arith.constant dense<0.000000e+00> : vector<8x8xf32>
    %14 = tpu.matmul %13, %10, %cst_13 {dimension_numbers = #tpu.dot_dimension_numbers<[1], [1], [0], [0], [0, 0, 1, 0], [], []>} : vector<8x8xbf16>, vector<8x8xbf16>, vector<8x8xf32> -> vector<8x8xf32>
    %cst_14 = arith.constant dense<0xFF800000> : vector<8xf32>
    %15 = vector.multi_reduction <maximumf>, %14, %cst_14 [1] : vector<8x8xf32> to vector<8xf32>
    %16 = vector.shape_cast %15 : vector<8xf32> to vector<8x1xf32>
    %17 = vector.broadcast %16 : vector<8x1xf32> to vector<8x8xf32>
    %18 = arith.subf %14, %17 : vector<8x8xf32>
    %19 = math.exp %18 : vector<8x8xf32>
    %cst_15 = arith.constant dense<0.000000e+00> : vector<8xf32>
    %20 = vector.multi_reduction <add>, %19, %cst_15 [1] : vector<8x8xf32> to vector<8xf32>
    %21 = vector.shape_cast %20 : vector<8xf32> to vector<8x1xf32>
    %22 = arith.truncf %19 : vector<8x8xf32> to vector<8x8xbf16>
    %cst_16 = arith.constant dense<0.000000e+00> : vector<8x8xf32>
    %23 = tpu.matmul %22, %12, %cst_16 {dimension_numbers = #tpu.dot_dimension_numbers<[1], [0], [0], [1], [0, 0, 1, 1], [], []>} : vector<8x8xbf16>, vector<8x8xbf16>, vector<8x8xf32> -> vector<8x8xf32>
    %24 = tpu.reciprocal %21 {approx = true} : vector<8x1xf32> -> vector<8x1xf32>
    %25 = vector.broadcast %24 : vector<8x1xf32> to vector<8x8xf32>
    %26 = arith.mulf %23, %25 : vector<8x8xf32>
    %c0_17 = arith.constant 0 : index
    %c0_18 = arith.constant 0 : index
    %27 = vector.load %arg10[%c0_17, %c0_18] : memref<8x32xf32, #tpu.memory_space<vmem>>, vector<8x32xf32>
    %28 = arith.truncf %26 : vector<8x8xf32> to vector<8x8xbf16>
    %29 = arith.index_cast %arg2 : i32 to index
    %c0_19 = arith.constant 0 : index
    %c0_20 = arith.constant 0 : index
    %30 = vector.load %arg7[%29, %c0_19, %c0_20] : memref<4x8x32xbf16, #tpu.memory_space<vmem>>, vector<1x8x32xbf16>
    %31 = vector.shape_cast %30 : vector<1x8x32xbf16> to vector<8x32xbf16>
    %cst_21 = arith.constant dense<0.000000e+00> : vector<8x32xf32>
    %32 = tpu.matmul %28, %31, %cst_21 {dimension_numbers = #tpu.dot_dimension_numbers<[1], [0], [0], [1], [0, 0, 1, 1], [], []>} : vector<8x8xbf16>, vector<8x32xbf16>, vector<8x32xf32> -> vector<8x32xf32>
    %33 = arith.addf %27, %32 : vector<8x32xf32>
    %c0_22 = arith.constant 0 : index
    %c0_23 = arith.constant 0 : index
    %34 = vector.load %arg10[%c0_22, %c0_23] : memref<8x32xf32, #tpu.memory_space<vmem>>, vector<8x32xf32>
    tpu.vector_store %arg10[%c0_22, %c0_23], %33 {strides = array<i32>} : memref<8x32xf32, #tpu.memory_space<vmem>>, vector<8x32xf32>,
    %c3_i32 = arith.constant 3 : i32
    %35 = arith.cmpi eq, %arg2, %c3_i32 : i32
    %36 = arith.extui %35 : i1 to i32
    %c0_i32_24 = arith.constant 0 : i32
    %37 = arith.cmpi ne, %36, %c0_i32_24 : i32
    scf.if %37 {
      %c0_25 = arith.constant 0 : index
      %c0_26 = arith.constant 0 : index
      %38 = vector.load %arg10[%c0_25, %c0_26] : memref<8x32xf32, #tpu.memory_space<vmem>>, vector<8x32xf32>
      %c0_27 = arith.constant 0 : index
      %c0_28 = arith.constant 0 : index
      %c0_29 = arith.constant 0 : index
      %39 = vector.load %arg9[%c0_27, %c0_28, %c0_29] : memref<1x8x32xf32, #tpu.memory_space<vmem>>, vector<1x8x32xf32>
      %40 = vector.shape_cast %39 : vector<1x8x32xf32> to vector<8x32xf32>
      %41 = vector.shape_cast %38 : vector<8x32xf32> to vector<1x8x32xf32>
      tpu.vector_store %arg9[%c0_27, %c0_28, %c0_29], %41 {strides = array<i32>} : memref<1x8x32xf32, #tpu.memory_space<vmem>>, vector<1x8x32xf32>,
    } else {
    }
    return
  }
  func.func @transform_0(%arg0: i32, %arg1: i32, %arg2: i32) -> (i32, i32, i32) {
    %c0_i32 = arith.constant 0 : i32
    %c0_i32_0 = arith.constant 0 : i32
    return %arg0, %arg1, %c0_i32 : i32, i32, i32
  }
  func.func @transform_1(%arg0: i32, %arg1: i32, %arg2: i32) -> (i32, i32, i32) {
    %c0_i32 = arith.constant 0 : i32
    %c0_i32_0 = arith.constant 0 : i32
    %c0_i32_1 = arith.constant 0 : i32
    %c0_i32_2 = arith.constant 0 : i32
    return %c0_i32, %c0_i32_0, %c0_i32_1 : i32, i32, i32
  }
  func.func @transform_2(%arg0: i32, %arg1: i32, %arg2: i32) -> (i32, i32, i32, i32) {
    %c0_i32 = arith.constant 0 : i32
    %c0_i32_0 = arith.constant 0 : i32
    %c0_i32_1 = arith.constant 0 : i32
    return %arg0, %arg2, %c0_i32, %c0_i32_0 : i32, i32, i32, i32
  }
  func.func @transform_3(%arg0: i32, %arg1: i32, %arg2: i32) -> (i32, i32, i32, i32) {
    %c0_i32 = arith.constant 0 : i32
    %c0_i32_0 = arith.constant 0 : i32
    %c0_i32_1 = arith.constant 0 : i32
    return %arg0, %arg2, %c0_i32, %c0_i32_0 : i32, i32, i32, i32
  }
  func.func @transform_4(%arg0: i32, %arg1: i32, %arg2: i32) -> (i32, i32, i32) {
    %c0_i32 = arith.constant 0 : i32
    %c0_i32_0 = arith.constant 0 : i32
    %c0_i32_1 = arith.constant 0 : i32
    %c0_i32_2 = arith.constant 0 : i32
    return %c0_i32, %c0_i32_0, %c0_i32_1 : i32, i32, i32
  }
  func.func @transform_5(%arg0: i32, %arg1: i32, %arg2: i32) -> (i32, i32) {
    %c0_i32 = arith.constant 0 : i32
    %c0_i32_0 = arith.constant 0 : i32
    %c0_i32_1 = arith.constant 0 : i32
    return %c0_i32, %c0_i32_0 : i32, i32
  }
  func.func @transform_6(%arg0: i32, %arg1: i32, %arg2: i32) -> (i32, i32, i32) {
    %c0_i32 = arith.constant 0 : i32
    %c0_i32_0 = arith.constant 0 : i32
    return %arg0, %arg1, %c0_i32 : i32, i32, i32
  }
}

</mosaic_0001>

<llo_original>
// kernel: attention_forward.2
$region0: #{attention_forward.2}
  #allocation0 [shape = 'u32[]', space=smem, size = 0x4, offset = 0x4, fixed_abs, tag = 'smem constant byte address 0x4 - core index']
  #allocation1 [shape = 'u32[144,128]{1,0:T(1,128)}', space=vmem, size = 0x12000, scoped, tag = 'internal scratch']
  %s0 = inlined_call_operand.vmem [shape: bf16[2,8,32], index: 0, kind: input, shape index: {}]
  %s1 = inlined_call_operand.vmem [shape: bf16[4,32,8], index: 1, kind: input, shape index: {}]
  %s2 = inlined_call_operand.vmem [shape: bf16[4,32,8], index: 2, kind: input, shape index: {}]
  %s3 = inlined_call_operand.vmem [shape: bf16[2,4,8,8], index: 3, kind: output, shape index: {0}]
  %s4 = inlined_call_operand.vmem [shape: bf16[2,4,8,8], index: 4, kind: output, shape index: {1}]
  %5 = xla_tuple %s3, %s4
  %s6 = sld [smem:[#allocation0]]
  $region60: #{attention_forward.2} parent=0
    _
  %s8 = ssub.s32 1, %s6
  %s9 = scalar_select 0, %s8, %s6
  loop: start=0, step=1, limit=4
  $region2: #{attention_forward.2} parent=0 // loop_pre_header
    _
  $region3: #{attention_forward.2} parent=0 // loop_header
    %s11 = sphi 0, %s15
    %p12 = scmp.ge.s32.totalorder %s11, 4
    %s18 = sphi 0, %s30
    %s19 = sphi 0, %s26
    %s20 = sphi 0, %s18
    %s21 = sphi 0, %s19
    %s22 = sphi 0, %s20
    %s23 = sphi 0, %s21
    %s35 = sphi 0, %s37
    %s38 = sphi 0, %s35
    %s39 = sphi 0, %s38
    %s55 = sphi 0, %s39
    %s59 = sphi 0, %s59
    %s61 = sphi 0, %s59
    %s62 = sphi 0, %s61
    %s76 = sphi 0, %s62
    %s80 = sphi 0, %s80
    %s82 = sphi 0, %s80
    %s83 = sphi 0, %s82
    %s97 = sphi 0, %s83
    %s105 = sphi 0, %s107
    %s108 = sphi 0, %s105
    %s109 = sphi 0, %s108
    %s125 = sphi 0, %s109
    %s133 = sphi 0, %s135
    %s136 = sphi 0, %s133
    %s137 = sphi 0, %s136
    %s153 = sphi 0, %s137
  $region4: #{attention_forward.2} parent=0 // loop_header_branch
    %14 = sbr.rel (%p12) target = $region8
  $region5: #{attention_forward.2} parent=0 // loop_body
    %s16 = ssub.s32 %s11, 1
    %s17 = ssub.s32 %s11, 2
    %s24 = sadd.s32 1, %s19
    %p25 = scmp.ge.s32.totalorder %s24, 1
    %s26 = scalar_select %p25, 0, %s24
    %s27 = sadd.s32 1, %s18
    %s28 = scalar_select %p25, %s27, %s18
    %p29 = scmp.ge.s32.totalorder %s28, 2
    %s30 = scalar_select %p29, 0, %s28
    %s31 = ssub.s32 %s18, %s30
    %s32 = ssub.s32 %s19, %s26
    %s33 = sor.u32 %s31, %s32
    %p34 = scmp.eq.s32.totalorder %s33, 0
    %s36 = sadd.s32 %s35, 1
    %s37 = scalar_select %p34, %s35, %s36
    %p40 = pneg %p34
    %p41 = scmp.eq.s32.totalorder %s11, 1
    %p42 = por %p40, %p41
    %p43 = scmp.ne.s32.totalorder %s35, %s38
    %p44 = scmp.eq.s32.totalorder %s11, 0
    %p45 = por %p43, %p44
    %p46 = scmp.ne.s32.totalorder %s35, %s38
    %p47 = scmp.eq.s32.totalorder %s16, 1
    %p48 = por %p46, %p47
    %p49 = scmp.ne.s32.totalorder %s38, %s39
    %p50 = scmp.eq.s32.totalorder %s16, 0
    %p51 = por %p49, %p50
    %p52 = scmp.ne.s32.totalorder %s38, %s39
    %p53 = scmp.eq.s32.totalorder %s17, 1
    %p54 = por %p52, %p53
    %p56 = scmp.ne.s32.totalorder %s39, %s55
    %p57 = scmp.eq.s32.totalorder %s17, 0
    %p58 = por %p56, %p57
    %s60 = sadd.s32 %s59, 1
    %p63 = scmp.eq.s32.totalorder %s11, 1
    %p64 = scmp.ne.s32.totalorder %s59, %s61
    %p65 = scmp.eq.s32.totalorder %s11, 0
    %p66 = por %p64, %p65
    %p67 = scmp.ne.s32.totalorder %s59, %s61
    %p68 = scmp.eq.s32.totalorder %s16, 1
    %p69 = por %p67, %p68
    %p70 = scmp.ne.s32.totalorder %s61, %s62
    %p71 = scmp.eq.s32.totalorder %s16, 0
    %p72 = por %p70, %p71
    %p73 = scmp.ne.s32.totalorder %s61, %s62
    %p74 = scmp.eq.s32.totalorder %s17, 1
    %p75 = por %p73, %p74
    %p77 = scmp.ne.s32.totalorder %s62, %s76
    %p78 = scmp.eq.s32.totalorder %s17, 0
    %p79 = por %p77, %p78
    %s81 = sadd.s32 %s80, 1
    %p84 = scmp.eq.s32.totalorder %s11, 1
    %p85 = scmp.ne.s32.totalorder %s80, %s82
    %p86 = scmp.eq.s32.totalorder %s11, 0
    %p87 = por %p85, %p86
    %p88 = scmp.ne.s32.totalorder %s80, %s82
    %p89 = scmp.eq.s32.totalorder %s16, 1
    %p90 = por %p88, %p89
    %p91 = scmp.ne.s32.totalorder %s82, %s83
    %p92 = scmp.eq.s32.totalorder %s16, 0
    %p93 = por %p91, %p92
    %p94 = scmp.ne.s32.totalorder %s82, %s83
    %p95 = scmp.eq.s32.totalorder %s17, 1
    %p96 = por %p94, %p95
    %p98 = scmp.ne.s32.totalorder %s83, %s97
    %p99 = scmp.eq.s32.totalorder %s17, 0
    %p100 = por %p98, %p99
    %s101 = ssub.s32 %s18, %s30
    %s102 = ssub.s32 %s19, %s26
    %s103 = sor.u32 %s101, %s102
    %p104 = scmp.eq.s32.totalorder %s103, 0
    %s106 = sadd.s32 %s105, 1
    %s107 = scalar_select %p104, %s105, %s106
    %p110 = pneg %p104
    %p111 = scmp.eq.s32.totalorder %s11, 1
    %p112 = por %p110, %p111
    %p113 = scmp.ne.s32.totalorder %s105, %s108
    %p114 = scmp.eq.s32.totalorder %s11, 0
    %p115 = por %p113, %p114
    %p116 = scmp.ne.s32.totalorder %s105, %s108
    %p117 = scmp.eq.s32.totalorder %s16, 1
    %p118 = por %p116, %p117
    %p119 = scmp.ne.s32.totalorder %s108, %s109
    %p120 = scmp.eq.s32.totalorder %s16, 0
    %p121 = por %p119, %p120
    %p122 = scmp.ne.s32.totalorder %s108, %s109
    %p123 = scmp.eq.s32.totalorder %s17, 1
    %p124 = por %p122, %p123
    %p126 = scmp.ne.s32.totalorder %s109, %s125
    %p127 = scmp.eq.s32.totalorder %s17, 0
    %p128 = por %p126, %p127
    %s129 = ssub.s32 %s18, %s30
    %s130 = ssub.s32 %s19, %s26
    %s131 = sor.u32 %s129, %s130
    %p132 = scmp.eq.s32.totalorder %s131, 0
    %s134 = sadd.s32 %s133, 1
    %s135 = scalar_select %p132, %s133, %s134
    %p138 = pneg %p132
    %p139 = scmp.eq.s32.totalorder %s11, 1
    %p140 = por %p138, %p139
    %p141 = scmp.ne.s32.totalorder %s133, %s136
    %p142 = scmp.eq.s32.totalorder %s11, 0
    %p143 = por %p141, %p142
    %p144 = scmp.ne.s32.totalorder %s133, %s136
    %p145 = scmp.eq.s32.totalorder %s16, 1
    %p146 = por %p144, %p145
    %p147 = scmp.ne.s32.totalorder %s136, %s137
    %p148 = scmp.eq.s32.totalorder %s16, 0
    %p149 = por %p147, %p148
    %p150 = scmp.ne.s32.totalorder %s136, %s137
    %p151 = scmp.eq.s32.totalorder %s17, 1
    %p152 = por %p150, %p151
    %p154 = scmp.ne.s32.totalorder %s137, %s153
    %p155 = scmp.eq.s32.totalorder %s17, 0
    %p156 = por %p154, %p155
    %p157 = scmp.le.s32.totalorder 1, %s11
    %p158 = scmp.lt.s32.totalorder %s11, 3
    %p159 = pnand %p157, %p158
    %p160 = pneg %p159
    // Predicated region
    $region9: #{attention_forward.2} parent=5 // pred_check
      _
    $region10: #{attention_forward.2} parent=5 // pred_check_branch
      %162 = sbr.rel (%p159) target = $region12
    $region11: #{attention_forward.2} parent=5 // pred_region
      %s163 = ssub.s32 %s11, 1
      // Predicated region
      $region13: #{attention_forward.2} parent=11 // pred_check
        %p164 = pneg %p72
      $region14: #{attention_forward.2} parent=11 // pred_check_branch
        %166 = sbr.rel (%p164) target = $region16
      $region15: #{attention_forward.2} parent=11 // pred_region
        _
      $region16: #{attention_forward.2} parent=11 // pred_fallthru
        _
      // Predicated region
      $region17: #{attention_forward.2} parent=11 // pred_check
        %p167 = pneg %p93
      $region18: #{attention_forward.2} parent=11 // pred_check_branch
        %169 = sbr.rel (%p167) target = $region20
      $region19: #{attention_forward.2} parent=11 // pred_region
        _
      $region20: #{attention_forward.2} parent=11 // pred_fallthru
        _
    $region12: #{attention_forward.2} parent=5 // pred_fallthru
      _
    %p170 = scmp.lt.s32.totalorder %s11, 2
    // Predicated region
    $region21: #{attention_forward.2} parent=5 // pred_check
      %p171 = pneg %p170
    $region22: #{attention_forward.2} parent=5 // pred_check_branch
      %173 = sbr.rel (%p171) target = $region24
    $region23: #{attention_forward.2} parent=5 // pred_region
      // Predicated region
      $region25: #{attention_forward.2} parent=23 // pred_check
        %p174 = pneg %p45
      $region26: #{attention_forward.2} parent=23 // pred_check_branch
        %176 = sbr.rel (%p174) target = $region28
      $region27: #{attention_forward.2} parent=23 // pred_region
        %p177 = scmp.lt.s32.totalorder %s18, 1
        %s178 = scalar_select %p177, %s18, 1
        %p179 = scmp.lt.s32.totalorder %s19, 0
        %s180 = scalar_select %p179, %s19, 0
        %s181 = sadd.s32 %s180, %s178
        %s182 = smul.addr %s181, 4
        %s183 = scalar_lea.vmem %s0, %s182
      $region28: #{attention_forward.2} parent=23 // pred_fallthru
        _
    $region24: #{attention_forward.2} parent=5 // pred_fallthru
      _
    %p184 = scmp.le.s32.totalorder 1, %s11
    %p185 = scmp.lt.s32.totalorder %s11, 3
    %p186 = pnand %p184, %p185
    %p187 = pneg %p186
    // Predicated region
    $region29: #{attention_forward.2} parent=5 // pred_check
      _
    $region30: #{attention_forward.2} parent=5 // pred_check_branch
      %189 = sbr.rel (%p186) target = $region32
    $region31: #{attention_forward.2} parent=5 // pred_region
      %s190 = ssub.s32 %s11, 1
      %p191 = scmp.lt.s32.totalorder %s20, 1
      %s192 = scalar_select %p191, %s20, 1
      %p193 = scmp.lt.s32.totalorder %s21, 0
      %s194 = scalar_select %p193, %s21, 0
      %s195 = sadd.s32 %s194, %s192
      %s196 = smul.addr %s195, 4
      %s197 = scalar_lea.vmem %s0, %s196
      %p198 = pneg %p51
      %p199 = pneg %p48
      %p200 = pneg %p72
      %p201 = pneg %p69
      %p202 = pneg %p93
      %p203 = pneg %p90
      %p204 = pneg %p121
      %p205 = pneg %p118
      %p206 = scmp.lt.s32.totalorder %s20, 1
      %s207 = scalar_select %p206, %s20, 1
      %p208 = scmp.lt.s32.totalorder %s21, 0
      %s209 = scalar_select %p208, %s21, 0
      %s210 = smul.addr %s207, 4
      %s211 = sadd.s32 %s209, %s210
      %s212 = smul.addr %s211, 4
      %s213 = scalar_lea.vmem %s3, %s212
      %p214 = pneg %p149
      %p215 = pneg %p146
      %p216 = scmp.lt.s32.totalorder %s20, 1
      %s217 = scalar_select %p216, %s20, 1
      %p218 = scmp.lt.s32.totalorder %s21, 0
      %s219 = scalar_select %p218, %s21, 0
      %s220 = smul.addr %s217, 4
      %s221 = sadd.s32 %s219, %s220
      %s222 = smul.addr %s221, 4
      %s223 = scalar_lea.vmem %s4, %s222
      %p224 = scmp.lt.s32.totalorder %s20, 1
      %s225 = scalar_select %p224, %s20, 1
      %p226 = scmp.lt.s32.totalorder %s21, 0
      %s227 = scalar_select %p226, %s21, 0
      %s228 = sadd.s32 %s227, %s225
      %s229 = smul.addr %s228, 4
      %s230 = scalar_lea.vmem %s0, %s229
      %p231 = scmp.lt.s32.totalorder %s20, 1
      %s232 = scalar_select %p231, %s20, 1
      %p233 = scmp.lt.s32.totalorder %s21, 0
      %s234 = scalar_select %p233, %s21, 0
      %s235 = smul.addr %s232, 4
      %s236 = sadd.s32 %s234, %s235
      %s237 = smul.addr %s236, 4
      %s238 = scalar_lea.vmem %s3, %s237
      %p239 = scmp.lt.s32.totalorder %s20, 1
      %s240 = scalar_select %p239, %s20, 1
      %p241 = scmp.lt.s32.totalorder %s21, 0
      %s242 = scalar_select %p241, %s21, 0
      %s243 = smul.addr %s240, 4
      %s244 = sadd.s32 %s242, %s243
      %s245 = smul.addr %s244, 4
      %s246 = scalar_lea.vmem %s4, %s245
      loop: start=0, step=1, limit=4
      $region33: #{attention_forward.2} parent=31 // loop_pre_header
        _
      $region34: #{attention_forward.2} parent=31 // loop_header
        %s249 = sphi 0, %s253
        %p250 = scmp.ge.s32.totalorder %s249, 4
      $region35: #{attention_forward.2} parent=31 // loop_header_branch
        %252 = sbr.rel (%p250) target = $region39
      $region36: #{attention_forward.2} parent=31 // loop_body
        %v254 = vld [vmem:[%s230] sm:$0xf]
        %s255 = smul.u32 %s249, 4
        %s256 = smul.addr %s255, 4
        %s257 = scalar_lea.vmem %s1, %s256
        %v258 = vld [vmem:[%s257] sm:$0xf]
        %v259 = vld [vmem:[%s257 + $0x4] sm:$0xf]
        %v260 = vld [vmem:[%s257 + $0x8] sm:$0xf]
        %v261 = vld [vmem:[%s257 + $0xc] sm:$0xf]
        %v266 = vunpack.c.l.b16 %v258
        %v267 = vunpack.c.l.b16 %v259
        %v268 = vunpack.c.l.b16 %v260
        %v269 = vunpack.c.l.b16 %v261
        %v270 = vpack.c.b16 %v267, %v266
        %v271 = vpack.c.b16 %v269, %v268
        %vm274 = vcmask 261120
        %v276 = vsel %vm274, %v254, 0
        %278 = vmatprep.subr.bf16.mxu0 0
        %279 = vmatpush1.bf16.msra.mxu0 0
        %280 = vmatprep.subr.bf16.mxu0 0
        %281 = vmatpush1.bf16.msra.mxu0 0
        %282 = vmatprep.subr.bf16.mxu0 0
        %283 = vmatpush1.bf16.msra.mxu0 0
        %284 = vmatprep.subr.bf16.mxu0 0
        %285 = vmatpush1.bf16.msra.mxu0 0
        %286 = vmatprep.subr.bf16.mxu0 0
        %287 = vmatpush1.bf16.msra.mxu0 0
        %288 = vmatprep.subr.bf16.mxu0 0
        %289 = vmatpush1.bf16.msra.mxu0 0
        %290 = vmatprep.subr.bf16.mxu0 0
        %291 = vmatpush1.bf16.msra.mxu0 %v271
        %292 = vmatprep.subr.bf16.mxu0 0
        %293 = vmatpush1.bf16.msra.mxu0 %v270
        %294 = vmatprep.subr.bf16.mxu0 0
        %295 = vmatpush2.bf16.msra.mxu0 0
        %296 = vmatprep.subr.bf16.mxu0 0
        %297 = vmatpush2.bf16.msra.mxu0 0
        %298 = vmatprep.subr.bf16.mxu0 0
        %299 = vmatpush2.bf16.msra.mxu0 0
        %300 = vmatprep.subr.bf16.mxu0 0
        %301 = vmatpush2.bf16.msra.mxu0 0
        %302 = vmatprep.subr.bf16.mxu0 0
        %303 = vmatpush2.bf16.msra.mxu0 0
        %304 = vmatprep.subr.bf16.mxu0 0
        %305 = vmatpush2.bf16.msra.mxu0 0
        %306 = vmatprep.subr.bf16.mxu0 0
        %307 = vmatpush2.bf16.msra.mxu0 0
        %308 = vmatprep.subr.bf16.mxu0 0
        %309 = vmatpush2.bf16.msra.mxu0 0
        %310 = vmatprep.mubr.bf16.mxu0 0
        %311 = vmatmul.mubr.bf16.gmra.mxu0 %v276
        %v312 = vpop.f32.mrf.mxu0
        %v313 = vadd.f32 0.0, %v312
        %v314 = vpop.f32.mrf.mxu0
        %v315 = vpop.f32.mrf.mxu0
        %v316 = vpop.f32.mrf.mxu0
        %317 = vdwg.mxu0
        %v318 = vpack.c.bf16 %v313, %v313
        %s319 = smul.addr %s249, 4
        %s320 = scalar_lea.vmem %s238, %s319
        %vm321 = vcmask 60416
        %322 = vst.msk [vmem:[%s320] sm:$0xf] %vm321, %v318
        %v323 = vld [vmem:[%s230] sm:$0xf]
        %s324 = smul.addr %s255, 4
        %s325 = scalar_lea.vmem %s2, %s324
        %v326 = vld [vmem:[%s325] sm:$0xf]
        %v327 = vld [vmem:[%s325 + $0x4] sm:$0xf]
        %v328 = vld [vmem:[%s325 + $0x8] sm:$0xf]
        %v329 = vld [vmem:[%s325 + $0xc] sm:$0xf]
        %v334 = vunpack.c.l.b16 %v326
        %v335 = vunpack.c.l.b16 %v327
        %v336 = vunpack.c.l.b16 %v328
        %v337 = vunpack.c.l.b16 %v329
        %v338 = vpack.c.b16 %v335, %v334
        %v339 = vpack.c.b16 %v337, %v336
        %v343 = vsel %vm274, %v323, 0
        %345 = vmatprep.subr.bf16.mxu0 0
        %346 = vmatpush1.bf16.msra.mxu0 0
        %347 = vmatprep.subr.bf16.mxu0 0
        %348 = vmatpush1.bf16.msra.mxu0 0
        %349 = vmatprep.subr.bf16.mxu0 0
        %350 = vmatpush1.bf16.msra.mxu0 0
        %351 = vmatprep.subr.bf16.mxu0 0
        %352 = vmatpush1.bf16.msra.mxu0 0
        %353 = vmatprep.subr.bf16.mxu0 0
        %354 = vmatpush1.bf16.msra.mxu0 0
        %355 = vmatprep.subr.bf16.mxu0 0
        %356 = vmatpush1.bf16.msra.mxu0 0
        %357 = vmatprep.subr.bf16.mxu0 0
        %358 = vmatpush1.bf16.msra.mxu0 %v339
        %359 = vmatprep.subr.bf16.mxu0 0
        %360 = vmatpush1.bf16.msra.mxu0 %v338
        %361 = vmatprep.subr.bf16.mxu0 0
        %362 = vmatpush2.bf16.msra.mxu0 0
        %363 = vmatprep.subr.bf16.mxu0 0
        %364 = vmatpush2.bf16.msra.mxu0 0
        %365 = vmatprep.subr.bf16.mxu0 0
        %366 = vmatpush2.bf16.msra.mxu0 0
        %367 = vmatprep.subr.bf16.mxu0 0
        %368 = vmatpush2.bf16.msra.mxu0 0
        %369 = vmatprep.subr.bf16.mxu0 0
        %370 = vmatpush2.bf16.msra.mxu0 0
        %371 = vmatprep.subr.bf16.mxu0 0
        %372 = vmatpush2.bf16.msra.mxu0 0
        %373 = vmatprep.subr.bf16.mxu0 0
        %374 = vmatpush2.bf16.msra.mxu0 0
        %375 = vmatprep.subr.bf16.mxu0 0
        %376 = vmatpush2.bf16.msra.mxu0 0
        %377 = vmatprep.mubr.bf16.mxu0 0
        %378 = vmatmul.mubr.bf16.gmra.mxu0 %v343
        %v379 = vpop.f32.mrf.mxu0
        %v380 = vadd.f32 0.0, %v379
        %v381 = vpop.f32.mrf.mxu0
        %v382 = vpop.f32.mrf.mxu0
        %v383 = vpop.f32.mrf.mxu0
        %384 = vdwg.mxu0
        %v385 = vpack.c.bf16 %v380, %v380
        %s386 = smul.addr %s249, 4
        %s387 = scalar_lea.vmem %s246, %s386
        %388 = vst.msk [vmem:[%s387] sm:$0xf] %vm321, %v385
      $region37: #{attention_forward.2} parent=31 // loop_footer
        %s253 = sadd.s32 1, %s249
      $region38: #{attention_forward.2} parent=31 // loop_footer_branch
        %248 = sbr.rel target = $region34
      $region39: #{attention_forward.2} parent=31 // loop_exit
        _
      %p389 = scmp.lt.s32.totalorder %s20, 1
      %s390 = scalar_select %p389, %s20, 1
      %p391 = scmp.lt.s32.totalorder %s21, 0
      %s392 = scalar_select %p391, %s21, 0
      %s393 = smul.addr %s390, 4
      %s394 = sadd.s32 %s392, %s393
      %s395 = smul.addr %s394, 4
      %s396 = scalar_lea.vmem %s3, %s395
      %p397 = scmp.lt.s32.totalorder %s20, 1
      %s398 = scalar_select %p397, %s20, 1
      %p399 = scmp.lt.s32.totalorder %s21, 0
      %s400 = scalar_select %p399, %s21, 0
      %s401 = smul.addr %s398, 4
      %s402 = sadd.s32 %s400, %s401
      %s403 = smul.addr %s402, 4
      %s404 = scalar_lea.vmem %s4, %s403
      // Predicated region
      $region40: #{attention_forward.2} parent=31 // pred_check
        %p405 = pneg %p118
      $region41: #{attention_forward.2} parent=31 // pred_check_branch
        %407 = sbr.rel (%p405) target = $region43
      $region42: #{attention_forward.2} parent=31 // pred_region
        _
      $region43: #{attention_forward.2} parent=31 // pred_fallthru
        _
      // Predicated region
      $region44: #{attention_forward.2} parent=31 // pred_check
        %p408 = pneg %p146
      $region45: #{attention_forward.2} parent=31 // pred_check_branch
        %410 = sbr.rel (%p408) target = $region47
      $region46: #{attention_forward.2} parent=31 // pred_region
        _
      $region47: #{attention_forward.2} parent=31 // pred_fallthru
        _
    $region32: #{attention_forward.2} parent=5 // pred_fallthru
      _
    %p411 = scmp.le.s32.totalorder 2, %s11
    // Predicated region
    $region48: #{attention_forward.2} parent=5 // pred_check
      %p412 = pneg %p411
    $region49: #{attention_forward.2} parent=5 // pred_check_branch
      %414 = sbr.rel (%p412) target = $region51
    $region50: #{attention_forward.2} parent=5 // pred_region
      %s415 = ssub.s32 %s11, 2
      // Predicated region
      $region52: #{attention_forward.2} parent=50 // pred_check
        %p416 = pneg %p124
      $region53: #{attention_forward.2} parent=50 // pred_check_branch
        %418 = sbr.rel (%p416) target = $region55
      $region54: #{attention_forward.2} parent=50 // pred_region
        %p419 = scmp.lt.s32.totalorder %s22, 1
        %s420 = scalar_select %p419, %s22, 1
        %p421 = scmp.lt.s32.totalorder %s23, 0
        %s422 = scalar_select %p421, %s23, 0
        %s423 = smul.addr %s420, 4
        %s424 = sadd.s32 %s422, %s423
        %s425 = smul.addr %s424, 4
        %s426 = scalar_lea.vmem %s3, %s425
      $region55: #{attention_forward.2} parent=50 // pred_fallthru
        _
      // Predicated region
      $region56: #{attention_forward.2} parent=50 // pred_check
        %p427 = pneg %p152
      $region57: #{attention_forward.2} parent=50 // pred_check_branch
        %429 = sbr.rel (%p427) target = $region59
      $region58: #{attention_forward.2} parent=50 // pred_region
        %p430 = scmp.lt.s32.totalorder %s22, 1
        %s431 = scalar_select %p430, %s22, 1
        %p432 = scmp.lt.s32.totalorder %s23, 0
        %s433 = scalar_select %p432, %s23, 0
        %s434 = smul.addr %s431, 4
        %s435 = sadd.s32 %s433, %s434
        %s436 = smul.addr %s435, 4
        %s437 = scalar_lea.vmem %s4, %s436
      $region59: #{attention_forward.2} parent=50 // pred_fallthru
        _
    $region51: #{attention_forward.2} parent=5 // pred_fallthru
      _
  $region6: #{attention_forward.2} parent=0 // loop_footer
    %s15 = sadd.s32 1, %s11
  $region7: #{attention_forward.2} parent=0 // loop_footer_branch
    %10 = sbr.rel target = $region3
  $region8: #{attention_forward.2} parent=0 // loop_exit
    _

// kernel: attention_forward.3
$region0: #{attention_forward.3}
  #allocation0 [shape = 'u32[]', space=smem, size = 0x4, offset = 0x4, fixed_abs, tag = 'smem constant byte address 0x4 - core index']
  #allocation1 [shape = 'u32[144,128]{1,0:T(1,128)}', space=vmem, size = 0x12000, scoped, tag = 'internal scratch']
  #allocation2 [shape = 'f32[8,32]{1,0:T(8,128)}', space=vmem, size = 0x1000, scoped, tag = 'scratch operand']
  %s0 = inlined_call_operand.vmem [shape: bf16[2,8,32], index: 0, kind: input, shape index: {}]
  %s1 = inlined_call_operand.vmem [shape: bf16[4,32,8], index: 1, kind: input, shape index: {}]
  %s2 = inlined_call_operand.vmem [shape: bf16[2,4,8,8], index: 2, kind: input, shape index: {}]
  %s3 = inlined_call_operand.vmem [shape: bf16[2,4,8,8], index: 3, kind: input, shape index: {}]
  %s4 = inlined_call_operand.vmem [shape: bf16[4,8,32], index: 4, kind: input, shape index: {}]
  %s5 = inlined_call_operand.vmem [shape: f32[1,32], index: 5, kind: input, shape index: {}]
  %s6 = inlined_call_operand.hbm [shape: f32[2,8,32], index: 6, kind: output, shape index: {}]
  %s7 = sld [smem:[#allocation0]]
  $region65: #{attention_forward.3} parent=0
    _
  %s9 = ssub.s32 1, %s7
  %s10 = scalar_select 0, %s9, %s7
  $region1: #{attention_forward.3} parent=0
    #allocation3 [shape = 'u8[8192]{0}', space=vmem, size = 0x2000, scoped, tag = 'output window, operand 0']
    #allocation4 [shape = 's32[2]{0}', space=sflag, size = 0x8, scoped, tag = 'scoped memory for attention_forward.3']
    %11 = vsyncpa [#allocation4], 0
    %s12 = scalar_lea.sflag [#allocation4], 1
    %13 = vsyncpa %s12, 0
    loop: start=0, step=1, limit=10
    $region2: #{attention_forward.3} parent=1 // loop_pre_header
      _
    $region3: #{attention_forward.3} parent=1 // loop_header
      %s15 = sphi 0, %s19
      %p16 = scmp.ge.s32.totalorder %s15, 10
      %s22 = sphi 0, %s41
      %s23 = sphi 0, %s37
      %s24 = sphi 0, %s33
      %s25 = sphi 0, %s22
      %s26 = sphi 0, %s23
      %s27 = sphi 0, %s24
      %s28 = sphi 0, %s25
      %s29 = sphi 0, %s26
      %s30 = sphi 0, %s27
      %s46 = sphi 0, %s48
      %s49 = sphi 0, %s46
      %s50 = sphi 0, %s49
      %s66 = sphi 0, %s50
      %s70 = sphi 0, %s70
      %s72 = sphi 0, %s70
      %s73 = sphi 0, %s72
      %s87 = sphi 0, %s73
      %s95 = sphi 0, %s97
      %s98 = sphi 0, %s95
      %s99 = sphi 0, %s98
      %s115 = sphi 0, %s99
      %s123 = sphi 0, %s125
      %s126 = sphi 0, %s123
      %s127 = sphi 0, %s126
      %s143 = sphi 0, %s127
      %s147 = sphi 0, %s147
      %s149 = sphi 0, %s147
      %s150 = sphi 0, %s149
      %s164 = sphi 0, %s150
      %s168 = sphi 0, %s168
      %s170 = sphi 0, %s168
      %s171 = sphi 0, %s170
      %s185 = sphi 0, %s171
      %s193 = sphi 0, %s195
      %s196 = sphi 0, %s193
      %s197 = sphi 0, %s196
      %s213 = sphi 0, %s197
    $region4: #{attention_forward.3} parent=1 // loop_header_branch
      %18 = sbr.rel (%p16) target = $region8
    $region5: #{attention_forward.3} parent=1 // loop_body
      %s20 = ssub.s32 %s15, 1
      %s21 = ssub.s32 %s15, 2
      %s31 = sadd.s32 1, %s24
      %p32 = scmp.ge.s32.totalorder %s31, 4
      %s33 = scalar_select %p32, 0, %s31
      %s34 = sadd.s32 1, %s23
      %s35 = scalar_select %p32, %s34, %s23
      %p36 = scmp.ge.s32.totalorder %s35, 1
      %s37 = scalar_select %p36, 0, %s35
      %s38 = sadd.s32 1, %s22
      %s39 = scalar_select %p36, %s38, %s22
      %p40 = scmp.ge.s32.totalorder %s39, 2
      %s41 = scalar_select %p40, 0, %s39
      %s42 = ssub.s32 %s22, %s41
      %s43 = ssub.s32 %s23, %s37
      %s44 = sor.u32 %s42, %s43
      %p45 = scmp.eq.s32.totalorder %s44, 0
      %s47 = sadd.s32 %s46, 1
      %s48 = scalar_select %p45, %s46, %s47
      %p51 = pneg %p45
      %p52 = scmp.eq.s32.totalorder %s15, 7
      %p53 = por %p51, %p52
      %p54 = scmp.ne.s32.totalorder %s46, %s49
      %p55 = scmp.eq.s32.totalorder %s15, 0
      %p56 = por %p54, %p55
      %p57 = scmp.ne.s32.totalorder %s46, %s49
      %p58 = scmp.eq.s32.totalorder %s20, 7
      %p59 = por %p57, %p58
      %p60 = scmp.ne.s32.totalorder %s49, %s50
      %p61 = scmp.eq.s32.totalorder %s20, 0
      %p62 = por %p60, %p61
      %p63 = scmp.ne.s32.totalorder %s49, %s50
      %p64 = scmp.eq.s32.totalorder %s21, 7
      %p65 = por %p63, %p64
      %p67 = scmp.ne.s32.totalorder %s50, %s66
      %p68 = scmp.eq.s32.totalorder %s21, 0
      %p69 = por %p67, %p68
      %s71 = sadd.s32 %s70, 1
      %p74 = scmp.eq.s32.totalorder %s15, 7
      %p75 = scmp.ne.s32.totalorder %s70, %s72
      %p76 = scmp.eq.s32.totalorder %s15, 0
      %p77 = por %p75, %p76
      %p78 = scmp.ne.s32.totalorder %s70, %s72
      %p79 = scmp.eq.s32.totalorder %s20, 7
      %p80 = por %p78, %p79
      %p81 = scmp.ne.s32.totalorder %s72, %s73
      %p82 = scmp.eq.s32.totalorder %s20, 0
      %p83 = por %p81, %p82
      %p84 = scmp.ne.s32.totalorder %s72, %s73
      %p85 = scmp.eq.s32.totalorder %s21, 7
      %p86 = por %p84, %p85
      %p88 = scmp.ne.s32.totalorder %s73, %s87
      %p89 = scmp.eq.s32.totalorder %s21, 0
      %p90 = por %p88, %p89
      %s91 = ssub.s32 %s22, %s41
      %s92 = ssub.s32 %s24, %s33
      %s93 = sor.u32 %s91, %s92
      %p94 = scmp.eq.s32.totalorder %s93, 0
      %s96 = sadd.s32 %s95, 1
      %s97 = scalar_select %p94, %s95, %s96
      %p100 = pneg %p94
      %p101 = scmp.eq.s32.totalorder %s15, 7
      %p102 = por %p100, %p101
      %p103 = scmp.ne.s32.totalorder %s95, %s98
      %p104 = scmp.eq.s32.totalorder %s15, 0
      %p105 = por %p103, %p104
      %p106 = scmp.ne.s32.totalorder %s95, %s98
      %p107 = scmp.eq.s32.totalorder %s20, 7
      %p108 = por %p106, %p107
      %p109 = scmp.ne.s32.totalorder %s98, %s99
      %p110 = scmp.eq.s32.totalorder %s20, 0
      %p111 = por %p109, %p110
      %p112 = scmp.ne.s32.totalorder %s98, %s99
      %p113 = scmp.eq.s32.totalorder %s21, 7
      %p114 = por %p112, %p113
      %p116 = scmp.ne.s32.totalorder %s99, %s115
      %p117 = scmp.eq.s32.totalorder %s21, 0
      %p118 = por %p116, %p117
      %s119 = ssub.s32 %s22, %s41
      %s120 = ssub.s32 %s24, %s33
      %s121 = sor.u32 %s119, %s120
      %p122 = scmp.eq.s32.totalorder %s121, 0
      %s124 = sadd.s32 %s123, 1
      %s125 = scalar_select %p122, %s123, %s124
      %p128 = pneg %p122
      %p129 = scmp.eq.s32.totalorder %s15, 7
      %p130 = por %p128, %p129
      %p131 = scmp.ne.s32.totalorder %s123, %s126
      %p132 = scmp.eq.s32.totalorder %s15, 0
      %p133 = por %p131, %p132
      %p134 = scmp.ne.s32.totalorder %s123, %s126
      %p135 = scmp.eq.s32.totalorder %s20, 7
      %p136 = por %p134, %p135
      %p137 = scmp.ne.s32.totalorder %s126, %s127
      %p138 = scmp.eq.s32.totalorder %s20, 0
      %p139 = por %p137, %p138
      %p140 = scmp.ne.s32.totalorder %s126, %s127
      %p141 = scmp.eq.s32.totalorder %s21, 7
      %p142 = por %p140, %p141
      %p144 = scmp.ne.s32.totalorder %s127, %s143
      %p145 = scmp.eq.s32.totalorder %s21, 0
      %p146 = por %p144, %p145
      %s148 = sadd.s32 %s147, 1
      %p151 = scmp.eq.s32.totalorder %s15, 7
      %p152 = scmp.ne.s32.totalorder %s147, %s149
      %p153 = scmp.eq.s32.totalorder %s15, 0
      %p154 = por %p152, %p153
      %p155 = scmp.ne.s32.totalorder %s147, %s149
      %p156 = scmp.eq.s32.totalorder %s20, 7
      %p157 = por %p155, %p156
      %p158 = scmp.ne.s32.totalorder %s149, %s150
      %p159 = scmp.eq.s32.totalorder %s20, 0
      %p160 = por %p158, %p159
      %p161 = scmp.ne.s32.totalorder %s149, %s150
      %p162 = scmp.eq.s32.totalorder %s21, 7
      %p163 = por %p161, %p162
      %p165 = scmp.ne.s32.totalorder %s150, %s164
      %p166 = scmp.eq.s32.totalorder %s21, 0
      %p167 = por %p165, %p166
      %s169 = sadd.s32 %s168, 1
      %p172 = scmp.eq.s32.totalorder %s15, 7
      %p173 = scmp.ne.s32.totalorder %s168, %s170
      %p174 = scmp.eq.s32.totalorder %s15, 0
      %p175 = por %p173, %p174
      %p176 = scmp.ne.s32.totalorder %s168, %s170
      %p177 = scmp.eq.s32.totalorder %s20, 7
      %p178 = por %p176, %p177
      %p179 = scmp.ne.s32.totalorder %s170, %s171
      %p180 = scmp.eq.s32.totalorder %s20, 0
      %p181 = por %p179, %p180
      %p182 = scmp.ne.s32.totalorder %s170, %s171
      %p183 = scmp.eq.s32.totalorder %s21, 7
      %p184 = por %p182, %p183
      %p186 = scmp.ne.s32.totalorder %s171, %s185
      %p187 = scmp.eq.s32.totalorder %s21, 0
      %p188 = por %p186, %p187
      %s189 = ssub.s32 %s22, %s41
      %s190 = ssub.s32 %s23, %s37
      %s191 = sor.u32 %s189, %s190
      %p192 = scmp.eq.s32.totalorder %s191, 0
      %s194 = sadd.s32 %s193, 1
      %s195 = scalar_select %p192, %s193, %s194
      %p198 = pneg %p192
      %p199 = scmp.eq.s32.totalorder %s15, 7
      %p200 = por %p198, %p199
      %p201 = scmp.ne.s32.totalorder %s193, %s196
      %p202 = scmp.eq.s32.totalorder %s15, 0
      %p203 = por %p201, %p202
      %p204 = scmp.ne.s32.totalorder %s193, %s196
      %p205 = scmp.eq.s32.totalorder %s20, 7
      %p206 = por %p204, %p205
      %p207 = scmp.ne.s32.totalorder %s196, %s197
      %p208 = scmp.eq.s32.totalorder %s20, 0
      %p209 = por %p207, %p208
      %p210 = scmp.ne.s32.totalorder %s196, %s197
      %p211 = scmp.eq.s32.totalorder %s21, 7
      %p212 = por %p210, %p211
      %p214 = scmp.ne.s32.totalorder %s197, %s213
      %p215 = scmp.eq.s32.totalorder %s21, 0
      %p216 = por %p214, %p215
      %p217 = scmp.le.s32.totalorder 1, %s15
      %p218 = scmp.lt.s32.totalorder %s15, 9
      %p219 = pnand %p217, %p218
      %p220 = pneg %p219
      // Predicated region
      $region9: #{attention_forward.3} parent=5 // pred_check
        _
      $region10: #{attention_forward.3} parent=5 // pred_check_branch
        %222 = sbr.rel (%p219) target = $region12
      $region11: #{attention_forward.3} parent=5 // pred_region
        %s223 = ssub.s32 %s15, 1
        // Predicated region
        $region13: #{attention_forward.3} parent=11 // pred_check
          %p224 = pneg %p83
        $region14: #{attention_forward.3} parent=11 // pred_check_branch
          %226 = sbr.rel (%p224) target = $region16
        $region15: #{attention_forward.3} parent=11 // pred_region
          _
        $region16: #{attention_forward.3} parent=11 // pred_fallthru
          _
        // Predicated region
        $region17: #{attention_forward.3} parent=11 // pred_check
          %p227 = pneg %p160
        $region18: #{attention_forward.3} parent=11 // pred_check_branch
          %229 = sbr.rel (%p227) target = $region20
        $region19: #{attention_forward.3} parent=11 // pred_region
          _
        $region20: #{attention_forward.3} parent=11 // pred_fallthru
          _
        // Predicated region
        $region21: #{attention_forward.3} parent=11 // pred_check
          %p230 = pneg %p181
        $region22: #{attention_forward.3} parent=11 // pred_check_branch
          %232 = sbr.rel (%p230) target = $region24
        $region23: #{attention_forward.3} parent=11 // pred_region
          _
        $region24: #{attention_forward.3} parent=11 // pred_fallthru
          _
      $region12: #{attention_forward.3} parent=5 // pred_fallthru
        _
      %p233 = scmp.lt.s32.totalorder %s15, 8
      // Predicated region
      $region25: #{attention_forward.3} parent=5 // pred_check
        %p234 = pneg %p233
      $region26: #{attention_forward.3} parent=5 // pred_check_branch
        %236 = sbr.rel (%p234) target = $region28
      $region27: #{attention_forward.3} parent=5 // pred_region
        // Predicated region
        $region29: #{attention_forward.3} parent=27 // pred_check
          %p237 = pneg %p56
        $region30: #{attention_forward.3} parent=27 // pred_check_branch
          %239 = sbr.rel (%p237) target = $region32
        $region31: #{attention_forward.3} parent=27 // pred_region
          %p240 = scmp.lt.s32.totalorder %s22, 1
          %s241 = scalar_select %p240, %s22, 1
          %p242 = scmp.lt.s32.totalorder %s23, 0
          %s243 = scalar_select %p242, %s23, 0
          %s244 = sadd.s32 %s243, %s241
          %s245 = smul.addr %s244, 4
          %s246 = scalar_lea.vmem %s0, %s245
        $region32: #{attention_forward.3} parent=27 // pred_fallthru
          _
        // Predicated region
        $region33: #{attention_forward.3} parent=27 // pred_check
          %p247 = pneg %p105
        $region34: #{attention_forward.3} parent=27 // pred_check_branch
          %249 = sbr.rel (%p247) target = $region36
        $region35: #{attention_forward.3} parent=27 // pred_region
          %p250 = scmp.lt.s32.totalorder %s22, 1
          %s251 = scalar_select %p250, %s22, 1
          %p252 = scmp.lt.s32.totalorder %s24, 3
          %s253 = scalar_select %p252, %s24, 3
          %s254 = smul.addr %s251, 4
          %s255 = sadd.s32 %s253, %s254
          %s256 = smul.addr %s255, 4
          %s257 = scalar_lea.vmem %s2, %s256
        $region36: #{attention_forward.3} parent=27 // pred_fallthru
          _
        // Predicated region
        $region37: #{attention_forward.3} parent=27 // pred_check
          %p258 = pneg %p133
        $region38: #{attention_forward.3} parent=27 // pred_check_branch
          %260 = sbr.rel (%p258) target = $region40
        $region39: #{attention_forward.3} parent=27 // pred_region
          %p261 = scmp.lt.s32.totalorder %s22, 1
          %s262 = scalar_select %p261, %s22, 1
          %p263 = scmp.lt.s32.totalorder %s24, 3
          %s264 = scalar_select %p263, %s24, 3
          %s265 = smul.addr %s262, 4
          %s266 = sadd.s32 %s264, %s265
          %s267 = smul.addr %s266, 4
          %s268 = scalar_lea.vmem %s3, %s267
        $region40: #{attention_forward.3} parent=27 // pred_fallthru
          _
      $region28: #{attention_forward.3} parent=5 // pred_fallthru
        _
      %p269 = scmp.le.s32.totalorder 1, %s15
      %p270 = scmp.lt.s32.totalorder %s15, 9
      %p271 = pnand %p269, %p270
      %p272 = pneg %p271
      // Predicated region
      $region41: #{attention_forward.3} parent=5 // pred_check
        _
      $region42: #{attention_forward.3} parent=5 // pred_check_branch
        %274 = sbr.rel (%p271) target = $region44
      $region43: #{attention_forward.3} parent=5 // pred_region
        %s275 = ssub.s32 %s15, 1
        %p276 = scmp.lt.s32.totalorder %s25, 1
        %s277 = scalar_select %p276, %s25, 1
        %p278 = scmp.lt.s32.totalorder %s26, 0
        %s279 = scalar_select %p278, %s26, 0
        %s280 = sadd.s32 %s279, %s277
        %s281 = smul.addr %s280, 4
        %s282 = scalar_lea.vmem %s0, %s281
        %p283 = pneg %p62
        %p284 = pneg %p59
        %p285 = pneg %p83
        %p286 = pneg %p80
        %p287 = scmp.lt.s32.totalorder %s25, 1
        %s288 = scalar_select %p287, %s25, 1
        %p289 = scmp.lt.s32.totalorder %s27, 3
        %s290 = scalar_select %p289, %s27, 3
        %s291 = smul.addr %s288, 4
        %s292 = sadd.s32 %s290, %s291
        %s293 = smul.addr %s292, 4
        %s294 = scalar_lea.vmem %s2, %s293
        %p295 = pneg %p111
        %p296 = pneg %p108
        %p297 = scmp.lt.s32.totalorder %s25, 1
        %s298 = scalar_select %p297, %s25, 1
        %p299 = scmp.lt.s32.totalorder %s27, 3
        %s300 = scalar_select %p299, %s27, 3
        %s301 = smul.addr %s298, 4
        %s302 = sadd.s32 %s300, %s301
        %s303 = smul.addr %s302, 4
        %s304 = scalar_lea.vmem %s3, %s303
        %p305 = pneg %p139
        %p306 = pneg %p136
        %p307 = pneg %p160
        %p308 = pneg %p157
        %p309 = pneg %p181
        %p310 = pneg %p178
        %p311 = pneg %p209
        %p312 = pneg %p206
        %s313 = sand.u32 %s196, 1
        %s314 = scalar_lea.sflag [#allocation4], %s313
        %s315 = sand.u32 %s196, 1
        %s316 = smul.addr %s315, 8
        %s317 = scalar_lea.vmem [#allocation3], %s316
        %p318 = scmp.lt.s32.totalorder %s25, 1
        %s319 = scalar_select %p318, %s25, 1
        %p320 = scmp.lt.s32.totalorder %s26, 0
        %s321 = scalar_select %p320, %s26, 0
        %s322 = sadd.s32 %s321, %s319
        %s323 = smul.addr %s322, 4
        %s324 = scalar_lea.vmem %s0, %s323
        %p325 = scmp.lt.s32.totalorder %s25, 1
        %s326 = scalar_select %p325, %s25, 1
        %p327 = scmp.lt.s32.totalorder %s27, 3
        %s328 = scalar_select %p327, %s27, 3
        %s329 = smul.addr %s326, 4
        %s330 = sadd.s32 %s328, %s329
        %s331 = smul.addr %s330, 4
        %s332 = scalar_lea.vmem %s2, %s331
        %p333 = scmp.lt.s32.totalorder %s25, 1
        %s334 = scalar_select %p333, %s25, 1
        %p335 = scmp.lt.s32.totalorder %s27, 3
        %s336 = scalar_select %p335, %s27, 3
        %s337 = smul.addr %s334, 4
        %s338 = sadd.s32 %s336, %s337
        %s339 = smul.addr %s338, 4
        %s340 = scalar_lea.vmem %s3, %s339
        %p342 = scmp.eq.s32.totalorder %s27, 0
        // Predicated region
        $region45: #{attention_forward.3} parent=43 // pred_check
          %p343 = pneg %p342
        $region46: #{attention_forward.3} parent=43 // pred_check_branch
          %345 = sbr.rel (%p343) target = $region48
        $region47: #{attention_forward.3} parent=43 // pred_region
          %v346 = vld [vmem:[%s5] sm:$0x1]
          %v348 = vlaneseq
          %v349 = vshrl.u32 %v348, 7
          %v350 = vsub.s32 0, %v349
          %v351 = vrot.slane %v346, %v350
          %vm353 = vcmask 261120
          %354 = vst.msk [vmem:[#allocation2] sm:$0xff] %vm353, %v351
        $region48: #{attention_forward.3} parent=43 // pred_fallthru
          _
        %v355 = vld [vmem:[%s324] sm:$0xf]
        %s356 = smul.u32 %s27, 4
        %s357 = smul.addr %s356, 4
        %s358 = scalar_lea.vmem %s1, %s357
        %v359 = vld [vmem:[%s358] sm:$0xf]
        %v360 = vld [vmem:[%s358 + $0x4] sm:$0xf]
        %v361 = vld [vmem:[%s358 + $0x8] sm:$0xf]
        %v362 = vld [vmem:[%s358 + $0xc] sm:$0xf]
        %v367 = vunpack.c.l.b16 %v359
        %v368 = vunpack.c.l.b16 %v360
        %v369 = vunpack.c.l.b16 %v361
        %v370 = vunpack.c.l.b16 %v362
        %v371 = vpack.c.b16 %v368, %v367
        %v372 = vpack.c.b16 %v370, %v369
        %vm375 = vcmask 261120
        %v377 = vsel %vm375, %v355, 0
        %379 = vmatprep.subr.bf16.mxu0 0
        %380 = vmatpush1.bf16.msra.mxu0 0
        %381 = vmatprep.subr.bf16.mxu0 0
        %382 = vmatpush1.bf16.msra.mxu0 0
        %383 = vmatprep.subr.bf16.mxu0 0
        %384 = vmatpush1.bf16.msra.mxu0 0
        %385 = vmatprep.subr.bf16.mxu0 0
        %386 = vmatpush1.bf16.msra.mxu0 0
        %387 = vmatprep.subr.bf16.mxu0 0
        %388 = vmatpush1.bf16.msra.mxu0 0
        %389 = vmatprep.subr.bf16.mxu0 0
        %390 = vmatpush1.bf16.msra.mxu0 0
        %391 = vmatprep.subr.bf16.mxu0 0
        %392 = vmatpush1.bf16.msra.mxu0 %v372
        %393 = vmatprep.subr.bf16.mxu0 0
        %394 = vmatpush1.bf16.msra.mxu0 %v371
        %395 = vmatprep.subr.bf16.mxu0 0
        %396 = vmatpush2.bf16.msra.mxu0 0
        %397 = vmatprep.subr.bf16.mxu0 0
        %398 = vmatpush2.bf16.msra.mxu0 0
        %399 = vmatprep.subr.bf16.mxu0 0
        %400 = vmatpush2.bf16.msra.mxu0 0
        %401 = vmatprep.subr.bf16.mxu0 0
        %402 = vmatpush2.bf16.msra.mxu0 0
        %403 = vmatprep.subr.bf16.mxu0 0
        %404 = vmatpush2.bf16.msra.mxu0 0
        %405 = vmatprep.subr.bf16.mxu0 0
        %406 = vmatpush2.bf16.msra.mxu0 0
        %407 = vmatprep.subr.bf16.mxu0 0
        %408 = vmatpush2.bf16.msra.mxu0 0
        %409 = vmatprep.subr.bf16.mxu0 0
        %410 = vmatpush2.bf16.msra.mxu0 0
        %411 = vmatprep.mubr.bf16.mxu0 0
        %412 = vmatmul.mubr.bf16.gmra.mxu0 %v377
        %v413 = vpop.f32.mrf.mxu0
        %v414 = vadd.f32 0.0, %v413
        %v415 = vpop.f32.mrf.mxu0
        %v416 = vpop.f32.mrf.mxu0
        %v417 = vpop.f32.mrf.mxu0
        %418 = vdwg.mxu0
        %v419 = vld [vmem:[%s332] sm:$0xf]
        %v420 = vld [vmem:[%s340] sm:$0xf]
        %v421 = vpack.c.bf16 %v414, %v414
        %vm422 = vcmask 64512
        %v424 = vsel %vm422, %v421, 0
        %v427 = vsel %vm422, %v419, 0
        %429 = vmatprep.subr.bf16.mxu0 0
        %430 = vmatpush1.bf16.xpose.msra.mxu0 0
        %431 = vmatprep.subr.bf16.mxu0 0
        %432 = vmatpush1.bf16.xpose.msra.mxu0 0
        %433 = vmatprep.subr.bf16.mxu0 0
        %434 = vmatpush1.bf16.xpose.msra.mxu0 0
        %435 = vmatprep.subr.bf16.mxu0 0
        %436 = vmatpush1.bf16.xpose.msra.mxu0 0
        %437 = vmatprep.subr.bf16.mxu0 0
        %438 = vmatpush1.bf16.xpose.msra.mxu0 0
        %439 = vmatprep.subr.bf16.mxu0 0
        %440 = vmatpush1.bf16.xpose.msra.mxu0 0
        %441 = vmatprep.subr.bf16.mxu0 0
        %442 = vmatpush1.bf16.xpose.msra.mxu0 0
        %443 = vmatprep.subr.bf16.mxu0 0
        %444 = vmatpush1.bf16.xpose.msra.mxu0 %v427
        %445 = vmatprep.subr.bf16.mxu0 0
        %446 = vmatpush2.bf16.xpose.msra.mxu0 0
        %447 = vmatprep.subr.bf16.mxu0 0
        %448 = vmatpush2.bf16.xpose.msra.mxu0 0
        %449 = vmatprep.subr.bf16.mxu0 0
        %450 = vmatpush2.bf16.xpose.msra.mxu0 0
        %451 = vmatprep.subr.bf16.mxu0 0
        %452 = vmatpush2.bf16.xpose.msra.mxu0 0
        %453 = vmatprep.subr.bf16.mxu0 0
        %454 = vmatpush2.bf16.xpose.msra.mxu0 0
        %455 = vmatprep.subr.bf16.mxu0 0
        %456 = vmatpush2.bf16.xpose.msra.mxu0 0
        %457 = vmatprep.subr.bf16.mxu0 0
        %458 = vmatpush2.bf16.xpose.msra.mxu0 0
        %459 = vmatprep.subr.bf16.mxu0 0
        %460 = vmatpush2.bf16.xpose.msra.mxu0 0
        %461 = vmatprep.mubr.bf16.mxu0 0
        %462 = vmatmul.mubr.bf16.gmra.mxu0 %v424
        %v463 = vpop.f32.mrf.mxu0
        %v464 = vadd.f32 0.0, %v463
        %v465 = vpop.f32.mrf.mxu0
        %v466 = vpop.f32.mrf.mxu0
        %v467 = vpop.f32.mrf.mxu0
        %468 = vdwg.mxu0
        %v469 = vsel %vm422, %v464, -inf
        %470 = vmax.xlane.f32.xlu0 %v469
        %v471 = vpop.xlane.xlu0 %470
        %v472 = vsub.f32 %v464, %v471
        %v473 = vmul.f32 %v472, 1.442695
        %v474 = vpow.pop %v473
        %v475 = vsel %vm422, %v474, 0.0
        %476 = vadd.xlane.f32.xlu0 %v475
        %v477 = vpop.xlane.xlu0 %476
        %v478 = vpack.c.bf16 %v474, %v474
        %v480 = vsel %vm422, %v478, 0
        %vm482 = vcmask 1043456
        %v484 = vsel %vm482, %v420, 0
        %486 = vmatprep.subr.bf16.mxu0 0
        %487 = vmatpush1.bf16.msra.mxu0 0
        %488 = vmatprep.subr.bf16.mxu0 0
        %489 = vmatpush1.bf16.msra.mxu0 0
        %490 = vmatprep.subr.bf16.mxu0 0
        %491 = vmatpush1.bf16.msra.mxu0 0
        %492 = vmatprep.subr.bf16.mxu0 0
        %493 = vmatpush1.bf16.msra.mxu0 0
        %494 = vmatprep.subr.bf16.mxu0 0
        %495 = vmatpush1.bf16.msra.mxu0 0
        %496 = vmatprep.subr.bf16.mxu0 0
        %497 = vmatpush1.bf16.msra.mxu0 0
        %498 = vmatprep.subr.bf16.mxu0 0
        %499 = vmatpush1.bf16.msra.mxu0 0
        %500 = vmatprep.subr.bf16.mxu0 0
        %501 = vmatpush1.bf16.msra.mxu0 %v484
        %502 = vmatprep.subr.bf16.mxu0 0
        %503 = vmatpush2.bf16.msra.mxu0 0
        %504 = vmatprep.subr.bf16.mxu0 0
        %505 = vmatpush2.bf16.msra.mxu0 0
        %506 = vmatprep.subr.bf16.mxu0 0
        %507 = vmatpush2.bf16.msra.mxu0 0
        %508 = vmatprep.subr.bf16.mxu0 0
        %509 = vmatpush2.bf16.msra.mxu0 0
        %510 = vmatprep.subr.bf16.mxu0 0
        %511 = vmatpush2.bf16.msra.mxu0 0
        %512 = vmatprep.subr.bf16.mxu0 0
        %513 = vmatpush2.bf16.msra.mxu0 0
        %514 = vmatprep.subr.bf16.mxu0 0
        %515 = vmatpush2.bf16.msra.mxu0 0
        %516 = vmatprep.subr.bf16.mxu0 0
        %517 = vmatpush2.bf16.msra.mxu0 0
        %518 = vmatprep.mubr.bf16.mxu0 0
        %519 = vmatmul.mubr.bf16.gmra.mxu0 %v480
        %v520 = vpop.f32.mrf.mxu0
        %v521 = vadd.f32 0.0, %v520
        %v522 = vpop.f32.mrf.mxu0
        %v523 = vpop.f32.mrf.mxu0
        %v524 = vpop.f32.mrf.mxu0
        %525 = vdwg.mxu0
        %v526 = vrcp.pop %v477
        %v527 = vmul.f32 %v521, %v526
        %v528 = vld [vmem:[#allocation2] sm:$0xff]
        %v529 = vpack.c.bf16 %v527, %v527
        %s530 = smul.addr %s27, 4
        %s531 = scalar_lea.vmem %s4, %s530
        %v532 = vld [vmem:[%s531] sm:$0xf]
        %v534 = vsel %vm422, %v529, 0
        %v537 = vsel %vm482, %v532, 0
        %539 = vmatprep.subr.bf16.mxu0 0
        %540 = vmatpush1.bf16.msra.mxu0 0
        %541 = vmatprep.subr.bf16.mxu0 0
        %542 = vmatpush1.bf16.msra.mxu0 0
        %543 = vmatprep.subr.bf16.mxu0 0
        %544 = vmatpush1.bf16.msra.mxu0 0
        %545 = vmatprep.subr.bf16.mxu0 0
        %546 = vmatpush1.bf16.msra.mxu0 0
        %547 = vmatprep.subr.bf16.mxu0 0
        %548 = vmatpush1.bf16.msra.mxu0 0
        %549 = vmatprep.subr.bf16.mxu0 0
        %550 = vmatpush1.bf16.msra.mxu0 0
        %551 = vmatprep.subr.bf16.mxu0 0
        %552 = vmatpush1.bf16.msra.mxu0 0
        %553 = vmatprep.subr.bf16.mxu0 0
        %554 = vmatpush1.bf16.msra.mxu0 %v537
        %555 = vmatprep.subr.bf16.mxu0 0
        %556 = vmatpush2.bf16.msra.mxu0 0
        %557 = vmatprep.subr.bf16.mxu0 0
        %558 = vmatpush2.bf16.msra.mxu0 0
        %559 = vmatprep.subr.bf16.mxu0 0
        %560 = vmatpush2.bf16.msra.mxu0 0
        %561 = vmatprep.subr.bf16.mxu0 0
        %562 = vmatpush2.bf16.msra.mxu0 0
        %563 = vmatprep.subr.bf16.mxu0 0
        %564 = vmatpush2.bf16.msra.mxu0 0
        %565 = vmatprep.subr.bf16.mxu0 0
        %566 = vmatpush2.bf16.msra.mxu0 0
        %567 = vmatprep.subr.bf16.mxu0 0
        %568 = vmatpush2.bf16.msra.mxu0 0
        %569 = vmatprep.subr.bf16.mxu0 0
        %570 = vmatpush2.bf16.msra.mxu0 0
        %571 = vmatprep.mubr.bf16.mxu0 0
        %572 = vmatmul.mubr.bf16.gmra.mxu0 %v534
        %v573 = vpop.f32.mrf.mxu0
        %v574 = vadd.f32 0.0, %v573
        %v575 = vpop.f32.mrf.mxu0
        %v576 = vpop.f32.mrf.mxu0
        %v577 = vpop.f32.mrf.mxu0
        %578 = vdwg.mxu0
        %v579 = vadd.f32 %v528, %v574
        %580 = vst.msk [vmem:[#allocation2] sm:$0xff] %vm375, %v579
        %p581 = scmp.eq.s32.totalorder %s27, 3
        // Predicated region
        $region49: #{attention_forward.3} parent=43 // pred_check
          %p582 = pneg %p581
        $region50: #{attention_forward.3} parent=43 // pred_check_branch
          %584 = sbr.rel (%p582) target = $region52
        $region51: #{attention_forward.3} parent=43 // pred_region
          %v585 = vld [vmem:[#allocation2] sm:$0xff]
          %586 = vst.msk [vmem:[%s317] sm:$0xff] %vm375, %v585
        $region52: #{attention_forward.3} parent=43 // pred_fallthru
          _
        %s587 = sand.u32 %s196, 1
        %s588 = scalar_lea.sflag [#allocation4], %s587
        %s589 = sand.u32 %s196, 1
        %s590 = smul.addr %s589, 8
        %s591 = scalar_lea.vmem [#allocation3], %s590
        // Predicated region
        $region53: #{attention_forward.3} parent=43 // pred_check
          %p592 = pneg %p206
        $region54: #{attention_forward.3} parent=43 // pred_check_branch
          %594 = sbr.rel (%p592) target = $region56
        $region55: #{attention_forward.3} parent=43 // pred_region
          %s596 = ssub.s32 128, 128
          %597 = vsyncadd %s588, %s596
          %s598 = sadd.s32 %s26, %s25
          %s599 = smul.addr %s598, 128
          %s600 = scalar_lea.hbm %s6, %s599
          %s602 = sshll.u32 %s591, 4
          %s603 = int_to_ptr.vmem [resolvable:$true] %s602
          %605 = dma.vmem_to_hbm [thread:$0]  %s603, 128, %s600, %s588
        $region56: #{attention_forward.3} parent=43 // pred_fallthru
          _
      $region44: #{attention_forward.3} parent=5 // pred_fallthru
        _
      %p606 = scmp.le.s32.totalorder 2, %s15
      // Predicated region
      $region57: #{attention_forward.3} parent=5 // pred_check
        %p607 = pneg %p606
      $region58: #{attention_forward.3} parent=5 // pred_check_branch
        %609 = sbr.rel (%p607) target = $region60
      $region59: #{attention_forward.3} parent=5 // pred_region
        %s610 = ssub.s32 %s15, 2
        // Predicated region
        $region61: #{attention_forward.3} parent=59 // pred_check
          %p611 = pneg %p212
        $region62: #{attention_forward.3} parent=59 // pred_check_branch
          %613 = sbr.rel (%p611) target = $region64
        $region63: #{attention_forward.3} parent=59 // pred_region
          %s614 = sand.u32 %s197, 1
          %s615 = scalar_lea.sflag [#allocation4], %s614
          %s616 = sand.u32 %s197, 1
          %s617 = smul.addr %s616, 8
          %s618 = scalar_lea.vmem [#allocation3], %s617
          %619 = dma.done %s615, 128
        $region64: #{attention_forward.3} parent=59 // pred_fallthru
          _
      $region60: #{attention_forward.3} parent=5 // pred_fallthru
        _
    $region6: #{attention_forward.3} parent=1 // loop_footer
      %s19 = sadd.s32 1, %s15
    $region7: #{attention_forward.3} parent=1 // loop_footer_branch
      %14 = sbr.rel target = $region3
    $region8: #{attention_forward.3} parent=1 // loop_exit
      _
    %620 = vsyncpa [#allocation4], 1
    %s621 = scalar_lea.sflag [#allocation4], 1
    %622 = vsyncpa %s621, 1

</llo_original>
